<compile_context>
chip_gen: v6e
topology: v6e:2x2x1
jax: 0.10.0
libtpu: 0.0.40
codegen_flags: <defaults>
</compile_context>

<pallas_src>
import functools

import jax
import jax.numpy as jnp
from jax import lax
from jax.experimental import pallas as pl
from jax.experimental.pallas import tpu as pltpu

BN_EPS = 1e-5
LEAKY_SLOPE = 0.1
LANE = 128       # lane width: Cout padded up to a multiple of this for the MXU
SUBLANE = 8      # f32 sublane tile


# ----------------------------- kernels --------------------------------------

def _matmul_and_stats(p_ref, w_ref, psum_ref, psq_ref):
    """MXU conv tile (f32 acc) + 8-row partial sum / sum-of-squares per chan."""
    conv = jnp.dot(p_ref[...], w_ref[...], preferred_element_type=jnp.float32)
    tm, cp = conv.shape
    g = conv.reshape(tm // SUBLANE, SUBLANE, cp)
    # Reduce over the leading (vreg-batch) axis: pure elementwise vreg adds,
    # no cross-sublane XLU reduction, no broadcast. XLA sums all 8 rows later.
    psum_ref[...] = jnp.sum(g, axis=0)
    psq_ref[...] = jnp.sum(g * g, axis=0)
    return conv


def _conv_store_stats_kernel(p_ref, w_ref, conv_ref, psum_ref, psq_ref):
    """Pass 1 (intermediate path): conv + stats + channel-exact bf16 store."""
    conv = _matmul_and_stats(p_ref, w_ref, psum_ref, psq_ref)
    cs = conv_ref.shape[-1]
    conv_ref[...] = conv[:, :cs].astype(conv_ref.dtype)


def _conv_stats_kernel(p_ref, w_ref, psum_ref, psq_ref):
    """Pass 1 (recompute path): conv + stats only."""
    _matmul_and_stats(p_ref, w_ref, psum_ref, psq_ref)


def _bn_act_kernel(conv_ref, scale_ref, shift_ref, out_ref):
    """Pass 2 (intermediate path): elementwise folded BN + LeakyReLU(0.1)."""
    y = conv_ref[...].astype(jnp.float32) * scale_ref[...] + shift_ref[...]
    out_ref[...] = jnp.where(y > 0, y, LEAKY_SLOPE * y).astype(out_ref.dtype)


def _conv_bn_act_kernel(p_ref, w_ref, scale_ref, shift_ref, out_ref):
    """Pass 2 (recompute path): conv again + folded BN + LeakyReLU(0.1)."""
    cs = out_ref.shape[-1]
    conv = jnp.dot(p_ref[...], w_ref[...], preferred_element_type=jnp.float32)
    y = conv[:, :cs] * scale_ref[...] + shift_ref[...]
    out_ref[...] = jnp.where(y > 0, y, LEAKY_SLOPE * y).astype(out_ref.dtype)


# ----------------------------- glue / wrapper --------------------------------

def _im2col_nhwc(x_nhwc, kh, kw, stride, pad):
    """Extract conv patches (in the input dtype). Returns (M, kh*kw*C), Ho, Wo."""
    n, h, w, c = x_nhwc.shape
    xp = jnp.pad(x_nhwc, ((0, 0), (pad, pad), (pad, pad), (0, 0)))
    ho = (h + 2 * pad - kh) // stride + 1
    wo = (w + 2 * pad - kw) // stride + 1
    pieces = []
    for i in range(kh):
        for j in range(kw):
            pieces.append(
                xp[:, i:i + ho * stride:stride, j:j + wo * stride:stride, :]
            )  # (N, Ho, Wo, C)
    p = jnp.stack(pieces, axis=3)  # (N, Ho, Wo, kh*kw, C)
    return p.reshape(n * ho * wo, kh * kw * c), ho, wo


@functools.partial(jax.jit, static_argnames=("kh", "kw", "stride", "pad", "tm"))
def block_forward(x_nchw, conv_w, gamma, beta, *, kh, kw, stride, pad, tm=512):
    """Equivalent of Block.forward(x) (training-mode batch statistics)."""
    n, cin, h, w = x_nchw.shape
    cout = conv_w.shape[0]
    assert tm % 16 == 0, "tm must be a multiple of 16 (bf16 sublane packing)"

    cp = ((cout + LANE - 1) // LANE) * LANE      # lane-dense Cout for the MXU
    cs = cout if cout < LANE else cp             # stored channel width (HBM)

    # ---- glue: NHWC + im2col built directly in bf16 ------------------------
    x_nhwc = jnp.transpose(x_nchw.astype(jnp.bfloat16), (0, 2, 3, 1))
    patches, ho, wo = _im2col_nhwc(x_nhwc, kh, kw, stride, pad)   # (M, K) bf16
    m, k = patches.shape

    num_tiles = pl.cdiv(m, tm)
    m_pad = num_tiles * tm
    if m_pad != m:
        patches = jnp.pad(patches, ((0, m_pad - m), (0, 0)))      # zero rows

    # (Cout, Cin, kh, kw) -> (kh, kw, Cin, Cout) -> (K, Cout) -> pad -> bf16
    w2d = jnp.transpose(conv_w, (2, 3, 1, 0)).reshape(k, cout)
    w2d = jnp.pad(w2d, ((0, 0), (0, cp - cout))).astype(jnp.bfloat16)

    gamma_p = jnp.pad(gamma.astype(jnp.float32), (0, cp - cout))
    beta_p = jnp.pad(beta.astype(jnp.float32), (0, cp - cout))

    # Recompute only when re-reading patches is cheaper than round-tripping a
    # bf16 conv intermediate (review heuristic: 9*Cin < ~2*Cout).
    use_intermediate = k >= 2 * cs

    grid = (num_tiles,)
    patch_spec = pl.BlockSpec((tm, k), lambda i: (i, 0))
    w_spec = pl.BlockSpec((k, cp), lambda i: (0, 0))
    stat_spec = pl.BlockSpec((SUBLANE, cp), lambda i: (i, 0))
    conv_spec = pl.BlockSpec((tm, cs), lambda i: (i, 0))
    ss_spec = pl.BlockSpec((1, cs), lambda i: (0, 0))
    out_spec = pl.BlockSpec((tm, cs), lambda i: (i, 0))

    # ---- VMEM budget: double-buffered footprint, clamped to 3/4 physical ---
    vmem_p1 = 2 * (tm * k * 2 + k * cp * 2 + 2 * SUBLANE * cp * 4)
    if use_intermediate:
        vmem_p1 += 2 * tm * cs * 2
        vmem_p2 = 2 * (2 * tm * cs * 2 + 2 * cs * 4)
    else:
        vmem_p2 = 2 * (tm * k * 2 + k * cp * 2 + tm * cs * 2 + 2 * cs * 4)
    vmem_need = max(vmem_p1, vmem_p2)
    try:
        phys_vmem = int(pltpu.get_tpu_info().vmem_capacity_bytes)
    except Exception:
        phys_vmem = 64 * 1024 * 1024   # conservative (v7x)
    vmem_limit = int(min(max(32 * 1024 * 1024, 2 * vmem_need),
                         (3 * phys_vmem) // 4))
    compiler_params = pltpu.CompilerParams(
        dimension_semantics=("parallel",), vmem_limit_bytes=vmem_limit)

    flops = 2 * m_pad * k * cp
    stats_bytes = 2 * num_tiles * SUBLANE * cp * 4

    # ---- pass 1: conv + partial stats (+ bf16 conv intermediate) -----------
    if use_intermediate:
        conv_bf, psum, psq = pl.pallas_call(
            _conv_store_stats_kernel,
            grid=grid,
            in_specs=[patch_spec, w_spec],
            out_specs=[conv_spec, stat_spec, stat_spec],
            out_shape=[
                jax.ShapeDtypeStruct((m_pad, cs), jnp.bfloat16),
                jax.ShapeDtypeStruct((num_tiles * SUBLANE, cp), jnp.float32),
                jax.ShapeDtypeStruct((num_tiles * SUBLANE, cp), jnp.float32),
            ],
            compiler_params=compiler_params,
            cost_estimate=pl.CostEstimate(
                flops=flops, transcendentals=0,
                bytes_accessed=m_pad * k * 2 + k * cp * 2
                + m_pad * cs * 2 + stats_bytes),
        )(patches, w2d)
    else:
        psum, psq = pl.pallas_call(
            _conv_stats_kernel,
            grid=grid,
            in_specs=[patch_spec, w_spec],
            out_specs=[stat_spec, stat_spec],
            out_shape=[
                jax.ShapeDtypeStruct((num_tiles * SUBLANE, cp), jnp.float32),
                jax.ShapeDtypeStruct((num_tiles * SUBLANE, cp), jnp.float32),
            ],
            compiler_params=compiler_params,
            cost_estimate=pl.CostEstimate(
                flops=flops, transcendentals=0,
                bytes_accessed=m_pad * k * 2 + k * cp * 2 + stats_bytes),
        )(patches, w2d)
        conv_bf = None

    # ---- tiny stats combine in XLA (padded rows contribute exactly 0) ------
    sum_c = jnp.sum(psum, axis=0)                 # (CP,)
    sq_c = jnp.sum(psq, axis=0)                   # (CP,)
    mean = sum_c / m
    # TODO(synk): E[x^2]-mean^2 in f32 can cancel for large-mean/low-variance
    # activations; a per-tile (count, mean, M2) Chan/Welford combine would be
    # more robust at the same kernel cost.
    var = jnp.maximum(sq_c / m - mean * mean, 0.0)   # biased var over true M
    inv_std = lax.rsqrt(var + BN_EPS)
    scale = (gamma_p * inv_std)[:cs].reshape(1, cs)
    shift = (beta_p - mean * gamma_p * inv_std)[:cs].reshape(1, cs)

    # ---- pass 2: folded BN affine + LeakyReLU, bf16 channel-exact output ---
    out_shape = jax.ShapeDtypeStruct((m_pad, cs), jnp.bfloat16)
    if use_intermediate:
        out_flat = pl.pallas_call(
            _bn_act_kernel,
            grid=grid,
            in_specs=[conv_spec, ss_spec, ss_spec],
            out_specs=out_spec,
            out_shape=out_shape,
            compiler_params=compiler_params,
            cost_estimate=pl.CostEstimate(
                flops=4 * m_pad * cs, transcendentals=0,
                bytes_accessed=2 * m_pad * cs * 2 + 2 * cs * 4),
        )(conv_bf, scale, shift)
    else:
        out_flat = pl.pallas_call(
            _conv_bn_act_kernel,
            grid=grid,
            in_specs=[patch_spec, w_spec, ss_spec, ss_spec],
            out_specs=out_spec,
            out_shape=out_shape,
            compiler_params=compiler_params,
            cost_estimate=pl.CostEstimate(
                flops=flops, transcendentals=0,
                bytes_accessed=m_pad * k * 2 + k * cp * 2
                + m_pad * cs * 2 + 2 * cs * 4),
        )(patches, w2d, scale, shift)

    # ---- glue: strip padding, cast back to f32 as part of the transpose ----
    out_nhwc = out_flat[:m, :cout].astype(jnp.float32).reshape(n, ho, wo, cout)
    return jnp.transpose(out_nhwc, (0, 3, 1, 2))


# ----------------------------- reference -------------------------------------

def _reference(x, conv_w, gamma, beta, stride, pad, *, round_conv_bf16):
    """Pure-JAX reference with matching bf16 rounding points."""
    y = lax.conv_general_dilated(
        x.astype(jnp.bfloat16), conv_w.astype(jnp.bfloat16),
        window_strides=(stride, stride), padding=[(pad, pad), (pad, pad)],
        dimension_numbers=("NCHW", "OIHW", "NCHW"),
        preferred_element_type=jnp.float32)
    mean = jnp.mean(y, axis=(0, 2, 3), keepdims=True)          # stats from f32
    var = jnp.mean((y - mean) ** 2, axis=(0, 2, 3), keepdims=True)
    if round_conv_bf16:                       # kernel stores conv in bf16
        y = y.astype(jnp.bfloat16).astype(jnp.float32)
    yn = (y - mean) * lax.rsqrt(var + BN_EPS)
    yn = yn * gamma.reshape(1, -1, 1, 1) + beta.reshape(1, -1, 1, 1)
    out = jnp.where(yn > 0, yn, LEAKY_SLOPE * yn)
    return out.astype(jnp.bfloat16).astype(jnp.float32)         # bf16 output


if __name__ == "__main__":
    key = jax.random.PRNGKey(0)
    k1, k2, k3, k4, k5, k6 = jax.random.split(key, 6)

    # ---- Test A: Block(4, 8, kernel_size=3, stride=1, padding=1) -----------
    # (intermediate path: K=36 >= 2*Cout_store=16; tm=128 -> 4 grid tiles)
    N, CIN, COUT, H, W = 2, 4, 8, 16, 16
    x = jax.random.normal(k1, (N, CIN, H, W), dtype=jnp.float32)
    fan_in = CIN * 3 * 3
    cw = jax.random.normal(k2, (COUT, CIN, 3, 3), jnp.float32) * (2.0 / fan_in) ** 0.5
    gamma = 1.0 + 0.1 * jax.random.normal(k3, (COUT,), jnp.float32)
    beta = 0.1 * jax.random.normal(k4, (COUT,), jnp.float32)

    out = block_forward(x, cw, gamma, beta, kh=3, kw=3, stride=1, pad=1, tm=128)
    out = jax.block_until_ready(out)
    ref = _reference(x, cw, gamma, beta, 1, 1, round_conv_bf16=True)
    assert out.shape == (N, COUT, H, W)
    # Tolerance covers ~1 bf16 ulp on the conv intermediate and output stores.
    err = float(jnp.max(jnp.abs(out - ref)))
    assert err < 5e-2, f"intermediate path mismatch vs reference: {err}"

    # ---- Test B: exercises the recompute path (9*Cin < 2*Cout) -------------
    N2, CIN2, COUT2 = 2, 1, 32
    x2 = jax.random.normal(k5, (N2, CIN2, H, W), dtype=jnp.float32)
    cw2 = jax.random.normal(k6, (COUT2, CIN2, 3, 3), jnp.float32) * (2.0 / 9.0) ** 0.5
    gamma2 = jnp.ones((COUT2,), jnp.float32)
    beta2 = jnp.zeros((COUT2,), jnp.float32)

    out2 = block_forward(x2, cw2, gamma2, beta2, kh=3, kw=3, stride=1, pad=1, tm=256)
    out2 = jax.block_until_ready(out2)
    ref2 = _reference(x2, cw2, gamma2, beta2, 1, 1, round_conv_bf16=False)
    assert out2.shape == (N2, COUT2, H, W)
    err2 = float(jnp.max(jnp.abs(out2 - ref2)))
    assert err2 < 5e-2, f"recompute path mismatch vs reference: {err2}"

    print("KERNEL_OK")
</pallas_src>

<mosaic_0001>
module attributes {stable_mosaic.version = 11 : i64} {
  func.func @_bn_act_kernel(%arg0: i32, %arg1: memref<128x8xbf16, #tpu.memory_space<vmem>>, %arg2: memref<1x8xf32, #tpu.memory_space<vmem>>, %arg3: memref<1x8xf32, #tpu.memory_space<vmem>>, %arg4: memref<128x8xbf16, #tpu.memory_space<vmem>>) attributes {dimension_semantics = [#tpu.dimension_semantics<parallel>], iteration_bounds = array<i64: 4>, scalar_prefetch = 0 : i64, scratch_operands = 0 : i64, tpu.core_type = #tpu.core_type<tc>, window_params = [{transform_indices = @transform_0, window_bounds = array<i64: 128, 8>}, {pipeline_mode = #tpu.pipeline_mode<synchronous>, transform_indices = @transform_1, window_bounds = array<i64: 1, 8>}, {pipeline_mode = #tpu.pipeline_mode<synchronous>, transform_indices = @transform_2, window_bounds = array<i64: 1, 8>}, {transform_indices = @transform_3, window_bounds = array<i64: 128, 8>}]} {
    %c0 = arith.constant 0 : index
    %c0_0 = arith.constant 0 : index
    %0 = vector.load %arg1[%c0, %c0_0] : memref<128x8xbf16, #tpu.memory_space<vmem>>, vector<128x8xbf16>
    %1 = arith.extf %0 : vector<128x8xbf16> to vector<128x8xf32>
    %c0_1 = arith.constant 0 : index
    %c0_2 = arith.constant 0 : index
    %2 = vector.load %arg2[%c0_1, %c0_2] : memref<1x8xf32, #tpu.memory_space<vmem>>, vector<1x8xf32>
    %3 = vector.broadcast %2 : vector<1x8xf32> to vector<128x8xf32>
    %4 = arith.mulf %1, %3 : vector<128x8xf32>
    %c0_3 = arith.constant 0 : index
    %c0_4 = arith.constant 0 : index
    %5 = vector.load %arg3[%c0_3, %c0_4] : memref<1x8xf32, #tpu.memory_space<vmem>>, vector<1x8xf32>
    %6 = vector.broadcast %5 : vector<1x8xf32> to vector<128x8xf32>
    %7 = arith.addf %4, %6 : vector<128x8xf32>
    %cst = arith.constant 0.000000e+00 : f32
    %8 = vector.broadcast %cst : f32 to vector<128x8xf32>
    %9 = arith.cmpf ogt, %7, %8 : vector<128x8xf32>
    %cst_5 = arith.constant 1.000000e-01 : f32
    %10 = vector.broadcast %cst_5 : f32 to vector<128x8xf32>
    %11 = arith.mulf %10, %7 : vector<128x8xf32>
    %12 = arith.select %9, %7, %11 : vector<128x8xi1>, vector<128x8xf32>
    %13 = arith.truncf %12 : vector<128x8xf32> to vector<128x8xbf16>
    %c0_6 = arith.constant 0 : index
    %c0_7 = arith.constant 0 : index
    %14 = vector.load %arg4[%c0_6, %c0_7] : memref<128x8xbf16, #tpu.memory_space<vmem>>, vector<128x8xbf16>
    tpu.vector_store %arg4[%c0_6, %c0_7], %13 {strides = array<i32>} : memref<128x8xbf16, #tpu.memory_space<vmem>>, vector<128x8xbf16>,
    return
  }
  func.func @transform_0(%arg0: i32) -> (i32, i32) {
    %c0_i32 = arith.constant 0 : i32
    %c0_i32_0 = arith.constant 0 : i32
    return %arg0, %c0_i32 : i32, i32
  }
  func.func @transform_1(%arg0: i32) -> (i32, i32) {
    %c0_i32 = arith.constant 0 : i32
    %c0_i32_0 = arith.constant 0 : i32
    %c0_i32_1 = arith.constant 0 : i32
    return %c0_i32, %c0_i32_0 : i32, i32
  }
  func.func @transform_2(%arg0: i32) -> (i32, i32) {
    %c0_i32 = arith.constant 0 : i32
    %c0_i32_0 = arith.constant 0 : i32
    %c0_i32_1 = arith.constant 0 : i32
    return %c0_i32, %c0_i32_0 : i32, i32
  }
  func.func @transform_3(%arg0: i32) -> (i32, i32) {
    %c0_i32 = arith.constant 0 : i32
    %c0_i32_0 = arith.constant 0 : i32
    return %arg0, %c0_i32 : i32, i32
  }
}

module attributes {stable_mosaic.version = 11 : i64} {
  func.func @_conv_store_stats_kernel(%arg0: i32, %arg1: memref<128x36xbf16, #tpu.memory_space<vmem>>, %arg2: memref<36x128xbf16, #tpu.memory_space<vmem>>, %arg3: memref<128x8xbf16, #tpu.memory_space<vmem>>, %arg4: memref<8x128xf32, #tpu.memory_space<vmem>>, %arg5: memref<8x128xf32, #tpu.memory_space<vmem>>) attributes {dimension_semantics = [#tpu.dimension_semantics<parallel>], iteration_bounds = array<i64: 4>, scalar_prefetch = 0 : i64, scratch_operands = 0 : i64, tpu.core_type = #tpu.core_type<tc>, window_params = [{transform_indices = @transform_0, window_bounds = array<i64: 128, 36>}, {pipeline_mode = #tpu.pipeline_mode<synchronous>, transform_indices = @transform_1, window_bounds = array<i64: 36, 128>}, {transform_indices = @transform_2, window_bounds = array<i64: 128, 8>}, {transform_indices = @transform_3, window_bounds = array<i64: 8, 128>}, {transform_indices = @transform_4, window_bounds = array<i64: 8, 128>}]} {
    %c0 = arith.constant 0 : index
    %c0_0 = arith.constant 0 : index
    %0 = vector.load %arg1[%c0, %c0_0] : memref<128x36xbf16, #tpu.memory_space<vmem>>, vector<128x36xbf16>
    %c0_1 = arith.constant 0 : index
    %c0_2 = arith.constant 0 : index
    %1 = vector.load %arg2[%c0_1, %c0_2] : memref<36x128xbf16, #tpu.memory_space<vmem>>, vector<36x128xbf16>
    %cst = arith.constant dense<0.000000e+00> : vector<128x128xf32>
    %2 = tpu.matmul %0, %1, %cst {dimension_numbers = #tpu.dot_dimension_numbers<[1], [0], [0], [1], [0, 0, 1, 1], [], []>} : vector<128x36xbf16>, vector<36x128xbf16>, vector<128x128xf32> -> vector<128x128xf32>
    %3 = vector.shape_cast %2 : vector<128x128xf32> to vector<16x8x128xf32>
    %cst_3 = arith.constant dense<0.000000e+00> : vector<8x128xf32>
    %4 = vector.multi_reduction <add>, %3, %cst_3 [0] : vector<16x8x128xf32> to vector<8x128xf32>
    %c0_4 = arith.constant 0 : index
    %c0_5 = arith.constant 0 : index
    %5 = vector.load %arg4[%c0_4, %c0_5] : memref<8x128xf32, #tpu.memory_space<vmem>>, vector<8x128xf32>
    tpu.vector_store %arg4[%c0_4, %c0_5], %4 {strides = array<i32>} : memref<8x128xf32, #tpu.memory_space<vmem>>, vector<8x128xf32>,
    %6 = arith.mulf %3, %3 : vector<16x8x128xf32>
    %cst_6 = arith.constant dense<0.000000e+00> : vector<8x128xf32>
    %7 = vector.multi_reduction <add>, %6, %cst_6 [0] : vector<16x8x128xf32> to vector<8x128xf32>
    %c0_7 = arith.constant 0 : index
    %c0_8 = arith.constant 0 : index
    %8 = vector.load %arg5[%c0_7, %c0_8] : memref<8x128xf32, #tpu.memory_space<vmem>>, vector<8x128xf32>
    tpu.vector_store %arg5[%c0_7, %c0_8], %7 {strides = array<i32>} : memref<8x128xf32, #tpu.memory_space<vmem>>, vector<8x128xf32>,
    %9 = vector.extract_strided_slice %2 {offsets = [0, 0], sizes = [128, 8], strides = [1, 1]} : vector<128x128xf32> to vector<128x8xf32>
    %10 = arith.truncf %9 : vector<128x8xf32> to vector<128x8xbf16>
    %c0_9 = arith.constant 0 : index
    %c0_10 = arith.constant 0 : index
    %11 = vector.load %arg3[%c0_9, %c0_10] : memref<128x8xbf16, #tpu.memory_space<vmem>>, vector<128x8xbf16>
    tpu.vector_store %arg3[%c0_9, %c0_10], %10 {strides = array<i32>} : memref<128x8xbf16, #tpu.memory_space<vmem>>, vector<128x8xbf16>,
    return
  }
  func.func @transform_0(%arg0: i32) -> (i32, i32) {
    %c0_i32 = arith.constant 0 : i32
    %c0_i32_0 = arith.constant 0 : i32
    return %arg0, %c0_i32 : i32, i32
  }
  func.func @transform_1(%arg0: i32) -> (i32, i32) {
    %c0_i32 = arith.constant 0 : i32
    %c0_i32_0 = arith.constant 0 : i32
    %c0_i32_1 = arith.constant 0 : i32
    return %c0_i32, %c0_i32_0 : i32, i32
  }
  func.func @transform_2(%arg0: i32) -> (i32, i32) {
    %c0_i32 = arith.constant 0 : i32
    %c0_i32_0 = arith.constant 0 : i32
    return %arg0, %c0_i32 : i32, i32
  }
  func.func @transform_3(%arg0: i32) -> (i32, i32) {
    %c0_i32 = arith.constant 0 : i32
    %c0_i32_0 = arith.constant 0 : i32
    return %arg0, %c0_i32 : i32, i32
  }
  func.func @transform_4(%arg0: i32) -> (i32, i32) {
    %c0_i32 = arith.constant 0 : i32
    %c0_i32_0 = arith.constant 0 : i32
    return %arg0, %c0_i32 : i32, i32
  }
}

</mosaic_0001>

<llo_original>
// kernel: block_forward.3
$region0: #{block_forward.3}
  #allocation0 [shape = 'u32[]', space=smem, size = 0x4, offset = 0x4, fixed_abs, tag = 'smem constant byte address 0x4 - core index']
  #allocation1 [shape = 'u32[144,128]{1,0:T(1,128)}', space=vmem, size = 0x12000, scoped, tag = 'internal scratch']
  %s0 = inlined_call_operand.vmem [shape: bf16[512,8], index: 0, kind: input, shape index: {}]
  %s1 = inlined_call_operand.vmem [shape: f32[1,8], index: 1, kind: input, shape index: {}]
  %s2 = inlined_call_operand.vmem [shape: f32[1,8], index: 2, kind: input, shape index: {}]
  %s3 = inlined_call_operand.vmem [shape: bf16[512,8], index: 3, kind: output, shape index: {}]
  %s4 = sld [smem:[#allocation0]]
  $region45: #{block_forward.3} parent=0
    _
  %s6 = ssub.s32 1, %s4
  %s7 = scalar_select 0, %s6, %s4
  loop: start=0, step=1, limit=6
  $region2: #{block_forward.3} parent=0 // loop_pre_header
    _
  $region3: #{block_forward.3} parent=0 // loop_header
    %s9 = sphi 0, %s13
    %p10 = scmp.ge.s32.totalorder %s9, 6
    %s19 = sphi 0, %s21
    %s22 = sphi 0, %s19
    %s23 = sphi 0, %s22
    %s39 = sphi 0, %s23
    %s43 = sphi 0, %s43
    %s45 = sphi 0, %s43
    %s46 = sphi 0, %s45
    %s60 = sphi 0, %s46
    %s64 = sphi 0, %s64
    %s66 = sphi 0, %s64
    %s67 = sphi 0, %s66
    %s81 = sphi 0, %s67
    %s87 = sphi 0, %s89
    %s90 = sphi 0, %s87
    %s91 = sphi 0, %s90
    %s107 = sphi 0, %s91
  $region4: #{block_forward.3} parent=0 // loop_header_branch
    %12 = sbr.rel (%p10) target = $region8
  $region5: #{block_forward.3} parent=0 // loop_body
    %s14 = ssub.s32 %s9, 1
    %s15 = ssub.s32 %s9, 2
    %s16 = sadd.s32 %s9, 1
    %s17 = ssub.s32 %s9, %s16
    %p18 = scmp.eq.s32.totalorder %s17, 0
    %s20 = sadd.s32 %s19, 1
    %s21 = scalar_select %p18, %s19, %s20
    %p24 = pneg %p18
    %p25 = scmp.eq.s32.totalorder %s9, 3
    %p26 = por %p24, %p25
    %p27 = scmp.ne.s32.totalorder %s19, %s22
    %p28 = scmp.eq.s32.totalorder %s9, 0
    %p29 = por %p27, %p28
    %p30 = scmp.ne.s32.totalorder %s19, %s22
    %p31 = scmp.eq.s32.totalorder %s14, 3
    %p32 = por %p30, %p31
    %p33 = scmp.ne.s32.totalorder %s22, %s23
    %p34 = scmp.eq.s32.totalorder %s14, 0
    %p35 = por %p33, %p34
    %p36 = scmp.ne.s32.totalorder %s22, %s23
    %p37 = scmp.eq.s32.totalorder %s15, 3
    %p38 = por %p36, %p37
    %p40 = scmp.ne.s32.totalorder %s23, %s39
    %p41 = scmp.eq.s32.totalorder %s15, 0
    %p42 = por %p40, %p41
    %s44 = sadd.s32 %s43, 1
    %p47 = scmp.eq.s32.totalorder %s9, 3
    %p48 = scmp.ne.s32.totalorder %s43, %s45
    %p49 = scmp.eq.s32.totalorder %s9, 0
    %p50 = por %p48, %p49
    %p51 = scmp.ne.s32.totalorder %s43, %s45
    %p52 = scmp.eq.s32.totalorder %s14, 3
    %p53 = por %p51, %p52
    %p54 = scmp.ne.s32.totalorder %s45, %s46
    %p55 = scmp.eq.s32.totalorder %s14, 0
    %p56 = por %p54, %p55
    %p57 = scmp.ne.s32.totalorder %s45, %s46
    %p58 = scmp.eq.s32.totalorder %s15, 3
    %p59 = por %p57, %p58
    %p61 = scmp.ne.s32.totalorder %s46, %s60
    %p62 = scmp.eq.s32.totalorder %s15, 0
    %p63 = por %p61, %p62
    %s65 = sadd.s32 %s64, 1
    %p68 = scmp.eq.s32.totalorder %s9, 3
    %p69 = scmp.ne.s32.totalorder %s64, %s66
    %p70 = scmp.eq.s32.totalorder %s9, 0
    %p71 = por %p69, %p70
    %p72 = scmp.ne.s32.totalorder %s64, %s66
    %p73 = scmp.eq.s32.totalorder %s14, 3
    %p74 = por %p72, %p73
    %p75 = scmp.ne.s32.totalorder %s66, %s67
    %p76 = scmp.eq.s32.totalorder %s14, 0
    %p77 = por %p75, %p76
    %p78 = scmp.ne.s32.totalorder %s66, %s67
    %p79 = scmp.eq.s32.totalorder %s15, 3
    %p80 = por %p78, %p79
    %p82 = scmp.ne.s32.totalorder %s67, %s81
    %p83 = scmp.eq.s32.totalorder %s15, 0
    %p84 = por %p82, %p83
    %s85 = ssub.s32 %s9, %s16
    %p86 = scmp.eq.s32.totalorder %s85, 0
    %s88 = sadd.s32 %s87, 1
    %s89 = scalar_select %p86, %s87, %s88
    %p92 = pneg %p86
    %p93 = scmp.eq.s32.totalorder %s9, 3
    %p94 = por %p92, %p93
    %p95 = scmp.ne.s32.totalorder %s87, %s90
    %p96 = scmp.eq.s32.totalorder %s9, 0
    %p97 = por %p95, %p96
    %p98 = scmp.ne.s32.totalorder %s87, %s90
    %p99 = scmp.eq.s32.totalorder %s14, 3
    %p100 = por %p98, %p99
    %p101 = scmp.ne.s32.totalorder %s90, %s91
    %p102 = scmp.eq.s32.totalorder %s14, 0
    %p103 = por %p101, %p102
    %p104 = scmp.ne.s32.totalorder %s90, %s91
    %p105 = scmp.eq.s32.totalorder %s15, 3
    %p106 = por %p104, %p105
    %p108 = scmp.ne.s32.totalorder %s91, %s107
    %p109 = scmp.eq.s32.totalorder %s15, 0
    %p110 = por %p108, %p109
    %p111 = scmp.le.s32.totalorder 1, %s9
    %p112 = scmp.lt.s32.totalorder %s9, 5
    %p113 = pnand %p111, %p112
    %p114 = pneg %p113
    // Predicated region
    $region9: #{block_forward.3} parent=5 // pred_check
      _
    $region10: #{block_forward.3} parent=5 // pred_check_branch
      %116 = sbr.rel (%p113) target = $region12
    $region11: #{block_forward.3} parent=5 // pred_region
      %s117 = ssub.s32 %s9, 1
      // Predicated region
      $region13: #{block_forward.3} parent=11 // pred_check
        %p118 = pneg %p56
      $region14: #{block_forward.3} parent=11 // pred_check_branch
        %120 = sbr.rel (%p118) target = $region16
      $region15: #{block_forward.3} parent=11 // pred_region
        _
      $region16: #{block_forward.3} parent=11 // pred_fallthru
        _
      // Predicated region
      $region17: #{block_forward.3} parent=11 // pred_check
        %p121 = pneg %p77
      $region18: #{block_forward.3} parent=11 // pred_check_branch
        %123 = sbr.rel (%p121) target = $region20
      $region19: #{block_forward.3} parent=11 // pred_region
        _
      $region20: #{block_forward.3} parent=11 // pred_fallthru
        _
    $region12: #{block_forward.3} parent=5 // pred_fallthru
      _
    %p124 = scmp.lt.s32.totalorder %s9, 4
    // Predicated region
    $region21: #{block_forward.3} parent=5 // pred_check
      %p125 = pneg %p124
    $region22: #{block_forward.3} parent=5 // pred_check_branch
      %127 = sbr.rel (%p125) target = $region24
    $region23: #{block_forward.3} parent=5 // pred_region
      // Predicated region
      $region25: #{block_forward.3} parent=23 // pred_check
        %p128 = pneg %p29
      $region26: #{block_forward.3} parent=23 // pred_check_branch
        %130 = sbr.rel (%p128) target = $region28
      $region27: #{block_forward.3} parent=23 // pred_region
        %s131 = smul.u32 16, %s9
        %p132 = scmp.lt.s32.totalorder %s131, 63
        %s133 = scalar_select %p132, %s131, 63
        %s134 = smul.addr %s133, 4
        %s135 = scalar_lea.vmem %s0, %s134
        %s136 = smul.u32 16, %s9
      $region28: #{block_forward.3} parent=23 // pred_fallthru
        _
    $region24: #{block_forward.3} parent=5 // pred_fallthru
      _
    %p137 = scmp.le.s32.totalorder 1, %s9
    %p138 = scmp.lt.s32.totalorder %s9, 5
    %p139 = pnand %p137, %p138
    %p140 = pneg %p139
    // Predicated region
    $region29: #{block_forward.3} parent=5 // pred_check
      _
    $region30: #{block_forward.3} parent=5 // pred_check_branch
      %142 = sbr.rel (%p139) target = $region32
    $region31: #{block_forward.3} parent=5 // pred_region
      %s143 = ssub.s32 %s9, 1
      %s144 = smul.u32 16, %s14
      %p145 = scmp.lt.s32.totalorder %s144, 63
      %s146 = scalar_select %p145, %s144, 63
      %s147 = smul.addr %s146, 4
      %s148 = scalar_lea.vmem %s0, %s147
      %p149 = pneg %p35
      %p150 = pneg %p32
      %p151 = pneg %p56
      %p152 = pneg %p53
      %p153 = pneg %p77
      %p154 = pneg %p74
      %p155 = pneg %p103
      %p156 = pneg %p100
      %s157 = smul.u32 16, %s14
      %p158 = scmp.lt.s32.totalorder %s157, 63
      %s159 = scalar_select %p158, %s157, 63
      %s160 = smul.addr %s159, 4
      %s161 = scalar_lea.vmem %s3, %s160
      %s162 = smul.u32 16, %s14
      %p163 = scmp.lt.s32.totalorder %s162, 63
      %s164 = scalar_select %p163, %s162, 63
      %s165 = smul.addr %s164, 4
      %s166 = scalar_lea.vmem %s0, %s165
      %s167 = smul.u32 16, %s14
      %s168 = smul.u32 16, %s14
      %p169 = scmp.lt.s32.totalorder %s168, 63
      %s170 = scalar_select %p169, %s168, 63
      %s171 = smul.addr %s170, 4
      %s172 = scalar_lea.vmem %s3, %s171
      %s173 = smul.u32 16, %s14
      %v174 = vld [vmem:[%s166] sm:$0xf]
      %v175 = vld [vmem:[%s166 + $0x4] sm:$0xf]
      %v176 = vld [vmem:[%s166 + $0x8] sm:$0xf]
      %v177 = vld [vmem:[%s166 + $0xc] sm:$0xf]
      %v178 = vld [vmem:[%s166 + $0x10] sm:$0xf]
      %v179 = vld [vmem:[%s166 + $0x14] sm:$0xf]
      %v180 = vld [vmem:[%s166 + $0x18] sm:$0xf]
      %v181 = vld [vmem:[%s166 + $0x1c] sm:$0xf]
      %v182 = vld [vmem:[%s166 + $0x20] sm:$0xf]
      %v183 = vld [vmem:[%s166 + $0x24] sm:$0xf]
      %v184 = vld [vmem:[%s166 + $0x28] sm:$0xf]
      %v185 = vld [vmem:[%s166 + $0x2c] sm:$0xf]
      %v186 = vld [vmem:[%s166 + $0x30] sm:$0xf]
      %v187 = vld [vmem:[%s166 + $0x34] sm:$0xf]
      %v188 = vld [vmem:[%s166 + $0x38] sm:$0xf]
      %v189 = vld [vmem:[%s166 + $0x3c] sm:$0xf]
      %v190 = vunpack.c.l.bf16 %v174
      %v191 = vunpack.c.l.bf16 %v175
      %v192 = vunpack.c.l.bf16 %v176
      %v193 = vunpack.c.l.bf16 %v177
      %v194 = vunpack.c.l.bf16 %v178
      %v195 = vunpack.c.l.bf16 %v179
      %v196 = vunpack.c.l.bf16 %v180
      %v197 = vunpack.c.l.bf16 %v181
      %v198 = vunpack.c.l.bf16 %v182
      %v199 = vunpack.c.l.bf16 %v183
      %v200 = vunpack.c.l.bf16 %v184
      %v201 = vunpack.c.l.bf16 %v185
      %v202 = vunpack.c.l.bf16 %v186
      %v203 = vunpack.c.l.bf16 %v187
      %v204 = vunpack.c.l.bf16 %v188
      %v205 = vunpack.c.l.bf16 %v189
      %v206 = vld [vmem:[%s1] sm:$0x1]
      %v208 = vlaneseq
      %v209 = vshrl.u32 %v208, 7
      %v210 = vsub.s32 0, %v209
      %v211 = vrot.slane %v206, %v210
      %v213 = vmul.f32 %v190, %v211
      %v214 = vmul.f32 %v191, %v211
      %v215 = vmul.f32 %v192, %v211
      %v216 = vmul.f32 %v193, %v211
      %v217 = vmul.f32 %v194, %v211
      %v218 = vmul.f32 %v195, %v211
      %v219 = vmul.f32 %v196, %v211
      %v220 = vmul.f32 %v197, %v211
      %v221 = vmul.f32 %v198, %v211
      %v222 = vmul.f32 %v199, %v211
      %v223 = vmul.f32 %v200, %v211
      %v224 = vmul.f32 %v201, %v211
      %v225 = vmul.f32 %v202, %v211
      %v226 = vmul.f32 %v203, %v211
      %v227 = vmul.f32 %v204, %v211
      %v228 = vmul.f32 %v205, %v211
      %v229 = vld [vmem:[%s2] sm:$0x1]
      %v231 = vlaneseq
      %v232 = vshrl.u32 %v231, 7
      %v233 = vsub.s32 0, %v232
      %v234 = vrot.slane %v229, %v233
      %v236 = vadd.f32 %v213, %v234
      %v237 = vadd.f32 %v214, %v234
      %v238 = vadd.f32 %v215, %v234
      %v239 = vadd.f32 %v216, %v234
      %v240 = vadd.f32 %v217, %v234
      %v241 = vadd.f32 %v218, %v234
      %v242 = vadd.f32 %v219, %v234
      %v243 = vadd.f32 %v220, %v234
      %v244 = vadd.f32 %v221, %v234
      %v245 = vadd.f32 %v222, %v234
      %v246 = vadd.f32 %v223, %v234
      %v247 = vadd.f32 %v224, %v234
      %v248 = vadd.f32 %v225, %v234
      %v249 = vadd.f32 %v226, %v234
      %v250 = vadd.f32 %v227, %v234
      %v251 = vadd.f32 %v228, %v234
      %vm252 = vcmp.gt.f32.partialorder %v236, 0.0
      %vm253 = vcmp.gt.f32.partialorder %v237, 0.0
      %vm254 = vcmp.gt.f32.partialorder %v238, 0.0
      %vm255 = vcmp.gt.f32.partialorder %v239, 0.0
      %vm256 = vcmp.gt.f32.partialorder %v240, 0.0
      %vm257 = vcmp.gt.f32.partialorder %v241, 0.0
      %vm258 = vcmp.gt.f32.partialorder %v242, 0.0
      %vm259 = vcmp.gt.f32.partialorder %v243, 0.0
      %vm260 = vcmp.gt.f32.partialorder %v244, 0.0
      %vm261 = vcmp.gt.f32.partialorder %v245, 0.0
      %vm262 = vcmp.gt.f32.partialorder %v246, 0.0
      %vm263 = vcmp.gt.f32.partialorder %v247, 0.0
      %vm264 = vcmp.gt.f32.partialorder %v248, 0.0
      %vm265 = vcmp.gt.f32.partialorder %v249, 0.0
      %vm266 = vcmp.gt.f32.partialorder %v250, 0.0
      %vm267 = vcmp.gt.f32.partialorder %v251, 0.0
      %v268 = vmul.f32 %v236, 0.1
      %v269 = vmul.f32 %v237, 0.1
      %v270 = vmul.f32 %v238, 0.1
      %v271 = vmul.f32 %v239, 0.1
      %v272 = vmul.f32 %v240, 0.1
      %v273 = vmul.f32 %v241, 0.1
      %v274 = vmul.f32 %v242, 0.1
      %v275 = vmul.f32 %v243, 0.1
      %v276 = vmul.f32 %v244, 0.1
      %v277 = vmul.f32 %v245, 0.1
      %v278 = vmul.f32 %v246, 0.1
      %v279 = vmul.f32 %v247, 0.1
      %v280 = vmul.f32 %v248, 0.1
      %v281 = vmul.f32 %v249, 0.1
      %v282 = vmul.f32 %v250, 0.1
      %v283 = vmul.f32 %v251, 0.1
      %v284 = vsel %vm252, %v236, %v268
      %v285 = vsel %vm253, %v237, %v269
      %v286 = vsel %vm254, %v238, %v270
      %v287 = vsel %vm255, %v239, %v271
      %v288 = vsel %vm256, %v240, %v272
      %v289 = vsel %vm257, %v241, %v273
      %v290 = vsel %vm258, %v242, %v274
      %v291 = vsel %vm259, %v243, %v275
      %v292 = vsel %vm260, %v244, %v276
      %v293 = vsel %vm261, %v245, %v277
      %v294 = vsel %vm262, %v246, %v278
      %v295 = vsel %vm263, %v247, %v279
      %v296 = vsel %vm264, %v248, %v280
      %v297 = vsel %vm265, %v249, %v281
      %v298 = vsel %vm266, %v250, %v282
      %v299 = vsel %vm267, %v251, %v283
      %v300 = vpack.c.bf16 %v285, %v284
      %v301 = vpack.c.bf16 %v287, %v286
      %v302 = vpack.c.bf16 %v289, %v288
      %v303 = vpack.c.bf16 %v291, %v290
      %v304 = vpack.c.bf16 %v293, %v292
      %v305 = vpack.c.bf16 %v295, %v294
      %v306 = vpack.c.bf16 %v297, %v296
      %v307 = vpack.c.bf16 %v299, %v298
      %v316 = vunpack.c.l.b16 %v300
      %v317 = vunpack.c.h.b16 %v300
      %v318 = vunpack.c.l.b16 %v301
      %v319 = vunpack.c.h.b16 %v301
      %v320 = vunpack.c.l.b16 %v302
      %v321 = vunpack.c.h.b16 %v302
      %v322 = vunpack.c.l.b16 %v303
      %v323 = vunpack.c.h.b16 %v303
      %v324 = vunpack.c.l.b16 %v304
      %v325 = vunpack.c.h.b16 %v304
      %v326 = vunpack.c.l.b16 %v305
      %v327 = vunpack.c.h.b16 %v305
      %v328 = vunpack.c.l.b16 %v306
      %v329 = vunpack.c.h.b16 %v306
      %v330 = vunpack.c.l.b16 %v307
      %v331 = vunpack.c.h.b16 %v307
      %v332 = vpack.c.b16 %v316, %v316
      %v333 = vpack.c.b16 %v317, %v317
      %v334 = vpack.c.b16 %v318, %v318
      %v335 = vpack.c.b16 %v319, %v319
      %v336 = vpack.c.b16 %v320, %v320
      %v337 = vpack.c.b16 %v321, %v321
      %v338 = vpack.c.b16 %v322, %v322
      %v339 = vpack.c.b16 %v323, %v323
      %v340 = vpack.c.b16 %v324, %v324
      %v341 = vpack.c.b16 %v325, %v325
      %v342 = vpack.c.b16 %v326, %v326
      %v343 = vpack.c.b16 %v327, %v327
      %v344 = vpack.c.b16 %v328, %v328
      %v345 = vpack.c.b16 %v329, %v329
      %v346 = vpack.c.b16 %v330, %v330
      %v347 = vpack.c.b16 %v331, %v331
      %vm364 = vcmask 60416
      %365 = vst.msk [vmem:[%s172] sm:$0xf] %vm364, %v332
      %366 = vst.msk [vmem:[%s172 + $0x4] sm:$0xf] %vm364, %v333
      %367 = vst.msk [vmem:[%s172 + $0x8] sm:$0xf] %vm364, %v334
      %368 = vst.msk [vmem:[%s172 + $0xc] sm:$0xf] %vm364, %v335
      %369 = vst.msk [vmem:[%s172 + $0x10] sm:$0xf] %vm364, %v336
      %370 = vst.msk [vmem:[%s172 + $0x14] sm:$0xf] %vm364, %v337
      %371 = vst.msk [vmem:[%s172 + $0x18] sm:$0xf] %vm364, %v338
      %372 = vst.msk [vmem:[%s172 + $0x1c] sm:$0xf] %vm364, %v339
      %373 = vst.msk [vmem:[%s172 + $0x20] sm:$0xf] %vm364, %v340
      %374 = vst.msk [vmem:[%s172 + $0x24] sm:$0xf] %vm364, %v341
      %375 = vst.msk [vmem:[%s172 + $0x28] sm:$0xf] %vm364, %v342
      %376 = vst.msk [vmem:[%s172 + $0x2c] sm:$0xf] %vm364, %v343
      %377 = vst.msk [vmem:[%s172 + $0x30] sm:$0xf] %vm364, %v344
      %378 = vst.msk [vmem:[%s172 + $0x34] sm:$0xf] %vm364, %v345
      %379 = vst.msk [vmem:[%s172 + $0x38] sm:$0xf] %vm364, %v346
      %380 = vst.msk [vmem:[%s172 + $0x3c] sm:$0xf] %vm364, %v347
      %s381 = smul.u32 16, %s14
      %p382 = scmp.lt.s32.totalorder %s381, 63
      %s383 = scalar_select %p382, %s381, 63
      %s384 = smul.addr %s383, 4
      %s385 = scalar_lea.vmem %s3, %s384
      // Predicated region
      $region33: #{block_forward.3} parent=31 // pred_check
        %p386 = pneg %p100
      $region34: #{block_forward.3} parent=31 // pred_check_branch
        %388 = sbr.rel (%p386) target = $region36
      $region35: #{block_forward.3} parent=31 // pred_region
        %s389 = smul.u32 16, %s14
      $region36: #{block_forward.3} parent=31 // pred_fallthru
        _
    $region32: #{block_forward.3} parent=5 // pred_fallthru
      _
    %p390 = scmp.le.s32.totalorder 2, %s9
    // Predicated region
    $region37: #{block_forward.3} parent=5 // pred_check
      %p391 = pneg %p390
    $region38: #{block_forward.3} parent=5 // pred_check_branch
      %393 = sbr.rel (%p391) target = $region40
    $region39: #{block_forward.3} parent=5 // pred_region
      %s394 = ssub.s32 %s9, 2
      // Predicated region
      $region41: #{block_forward.3} parent=39 // pred_check
        %p395 = pneg %p106
      $region42: #{block_forward.3} parent=39 // pred_check_branch
        %397 = sbr.rel (%p395) target = $region44
      $region43: #{block_forward.3} parent=39 // pred_region
        %s398 = smul.u32 16, %s15
        %p399 = scmp.lt.s32.totalorder %s398, 63
        %s400 = scalar_select %p399, %s398, 63
        %s401 = smul.addr %s400, 4
        %s402 = scalar_lea.vmem %s3, %s401
      $region44: #{block_forward.3} parent=39 // pred_fallthru
        _
    $region40: #{block_forward.3} parent=5 // pred_fallthru
      _
  $region6: #{block_forward.3} parent=0 // loop_footer
    %s13 = sadd.s32 1, %s9
  $region7: #{block_forward.3} parent=0 // loop_footer_branch
    %8 = sbr.rel target = $region3
  $region8: #{block_forward.3} parent=0 // loop_exit
    _

// kernel: block_forward.2
$region0: #{block_forward.2}
  #allocation0 [shape = 'u32[]', space=smem, size = 0x4, offset = 0x4, fixed_abs, tag = 'smem constant byte address 0x4 - core index']
  #allocation1 [shape = 'u32[144,128]{1,0:T(1,128)}', space=vmem, size = 0x12000, scoped, tag = 'internal scratch']
  %s0 = inlined_call_operand.vmem [shape: bf16[512,36], index: 0, kind: input, shape index: {}]
  %s1 = inlined_call_operand.vmem [shape: bf16[36,128], index: 1, kind: input, shape index: {}]
  %s2 = inlined_call_operand.vmem [shape: bf16[512,8], index: 2, kind: output, shape index: {0}]
  %s3 = inlined_call_operand.vmem [shape: f32[32,128], index: 3, kind: output, shape index: {1}]
  %s4 = inlined_call_operand.vmem [shape: f32[32,128], index: 4, kind: output, shape index: {2}]
  %5 = xla_tuple %s2, %s3, %s4
  %s6 = sld [smem:[#allocation0]]
  $region57: #{block_forward.2} parent=0
    _
  %s8 = ssub.s32 1, %s6
  %s9 = scalar_select 0, %s8, %s6
  loop: start=0, step=1, limit=6
  $region2: #{block_forward.2} parent=0 // loop_pre_header
    _
  $region3: #{block_forward.2} parent=0 // loop_header
    %s11 = sphi 0, %s15
    %p12 = scmp.ge.s32.totalorder %s11, 6
    %s21 = sphi 0, %s23
    %s24 = sphi 0, %s21
    %s25 = sphi 0, %s24
    %s41 = sphi 0, %s25
    %s45 = sphi 0, %s45
    %s47 = sphi 0, %s45
    %s48 = sphi 0, %s47
    %s62 = sphi 0, %s48
    %s68 = sphi 0, %s70
    %s71 = sphi 0, %s68
    %s72 = sphi 0, %s71
    %s88 = sphi 0, %s72
    %s94 = sphi 0, %s96
    %s97 = sphi 0, %s94
    %s98 = sphi 0, %s97
    %s114 = sphi 0, %s98
    %s120 = sphi 0, %s122
    %s123 = sphi 0, %s120
    %s124 = sphi 0, %s123
    %s140 = sphi 0, %s124
  $region4: #{block_forward.2} parent=0 // loop_header_branch
    %14 = sbr.rel (%p12) target = $region8
  $region5: #{block_forward.2} parent=0 // loop_body
    %s16 = ssub.s32 %s11, 1
    %s17 = ssub.s32 %s11, 2
    %s18 = sadd.s32 %s11, 1
    %s19 = ssub.s32 %s11, %s18
    %p20 = scmp.eq.s32.totalorder %s19, 0
    %s22 = sadd.s32 %s21, 1
    %s23 = scalar_select %p20, %s21, %s22
    %p26 = pneg %p20
    %p27 = scmp.eq.s32.totalorder %s11, 3
    %p28 = por %p26, %p27
    %p29 = scmp.ne.s32.totalorder %s21, %s24
    %p30 = scmp.eq.s32.totalorder %s11, 0
    %p31 = por %p29, %p30
    %p32 = scmp.ne.s32.totalorder %s21, %s24
    %p33 = scmp.eq.s32.totalorder %s16, 3
    %p34 = por %p32, %p33
    %p35 = scmp.ne.s32.totalorder %s24, %s25
    %p36 = scmp.eq.s32.totalorder %s16, 0
    %p37 = por %p35, %p36
    %p38 = scmp.ne.s32.totalorder %s24, %s25
    %p39 = scmp.eq.s32.totalorder %s17, 3
    %p40 = por %p38, %p39
    %p42 = scmp.ne.s32.totalorder %s25, %s41
    %p43 = scmp.eq.s32.totalorder %s17, 0
    %p44 = por %p42, %p43
    %s46 = sadd.s32 %s45, 1
    %p49 = scmp.eq.s32.totalorder %s11, 3
    %p50 = scmp.ne.s32.totalorder %s45, %s47
    %p51 = scmp.eq.s32.totalorder %s11, 0
    %p52 = por %p50, %p51
    %p53 = scmp.ne.s32.totalorder %s45, %s47
    %p54 = scmp.eq.s32.totalorder %s16, 3
    %p55 = por %p53, %p54
    %p56 = scmp.ne.s32.totalorder %s47, %s48
    %p57 = scmp.eq.s32.totalorder %s16, 0
    %p58 = por %p56, %p57
    %p59 = scmp.ne.s32.totalorder %s47, %s48
    %p60 = scmp.eq.s32.totalorder %s17, 3
    %p61 = por %p59, %p60
    %p63 = scmp.ne.s32.totalorder %s48, %s62
    %p64 = scmp.eq.s32.totalorder %s17, 0
    %p65 = por %p63, %p64
    %s66 = ssub.s32 %s11, %s18
    %p67 = scmp.eq.s32.totalorder %s66, 0
    %s69 = sadd.s32 %s68, 1
    %s70 = scalar_select %p67, %s68, %s69
    %p73 = pneg %p67
    %p74 = scmp.eq.s32.totalorder %s11, 3
    %p75 = por %p73, %p74
    %p76 = scmp.ne.s32.totalorder %s68, %s71
    %p77 = scmp.eq.s32.totalorder %s11, 0
    %p78 = por %p76, %p77
    %p79 = scmp.ne.s32.totalorder %s68, %s71
    %p80 = scmp.eq.s32.totalorder %s16, 3
    %p81 = por %p79, %p80
    %p82 = scmp.ne.s32.totalorder %s71, %s72
    %p83 = scmp.eq.s32.totalorder %s16, 0
    %p84 = por %p82, %p83
    %p85 = scmp.ne.s32.totalorder %s71, %s72
    %p86 = scmp.eq.s32.totalorder %s17, 3
    %p87 = por %p85, %p86
    %p89 = scmp.ne.s32.totalorder %s72, %s88
    %p90 = scmp.eq.s32.totalorder %s17, 0
    %p91 = por %p89, %p90
    %s92 = ssub.s32 %s11, %s18
    %p93 = scmp.eq.s32.totalorder %s92, 0
    %s95 = sadd.s32 %s94, 1
    %s96 = scalar_select %p93, %s94, %s95
    %p99 = pneg %p93
    %p100 = scmp.eq.s32.totalorder %s11, 3
    %p101 = por %p99, %p100
    %p102 = scmp.ne.s32.totalorder %s94, %s97
    %p103 = scmp.eq.s32.totalorder %s11, 0
    %p104 = por %p102, %p103
    %p105 = scmp.ne.s32.totalorder %s94, %s97
    %p106 = scmp.eq.s32.totalorder %s16, 3
    %p107 = por %p105, %p106
    %p108 = scmp.ne.s32.totalorder %s97, %s98
    %p109 = scmp.eq.s32.totalorder %s16, 0
    %p110 = por %p108, %p109
    %p111 = scmp.ne.s32.totalorder %s97, %s98
    %p112 = scmp.eq.s32.totalorder %s17, 3
    %p113 = por %p111, %p112
    %p115 = scmp.ne.s32.totalorder %s98, %s114
    %p116 = scmp.eq.s32.totalorder %s17, 0
    %p117 = por %p115, %p116
    %s118 = ssub.s32 %s11, %s18
    %p119 = scmp.eq.s32.totalorder %s118, 0
    %s121 = sadd.s32 %s120, 1
    %s122 = scalar_select %p119, %s120, %s121
    %p125 = pneg %p119
    %p126 = scmp.eq.s32.totalorder %s11, 3
    %p127 = por %p125, %p126
    %p128 = scmp.ne.s32.totalorder %s120, %s123
    %p129 = scmp.eq.s32.totalorder %s11, 0
    %p130 = por %p128, %p129
    %p131 = scmp.ne.s32.totalorder %s120, %s123
    %p132 = scmp.eq.s32.totalorder %s16, 3
    %p133 = por %p131, %p132
    %p134 = scmp.ne.s32.totalorder %s123, %s124
    %p135 = scmp.eq.s32.totalorder %s16, 0
    %p136 = por %p134, %p135
    %p137 = scmp.ne.s32.totalorder %s123, %s124
    %p138 = scmp.eq.s32.totalorder %s17, 3
    %p139 = por %p137, %p138
    %p141 = scmp.ne.s32.totalorder %s124, %s140
    %p142 = scmp.eq.s32.totalorder %s17, 0
    %p143 = por %p141, %p142
    %p144 = scmp.le.s32.totalorder 1, %s11
    %p145 = scmp.lt.s32.totalorder %s11, 5
    %p146 = pnand %p144, %p145
    %p147 = pneg %p146
    // Predicated region
    $region9: #{block_forward.2} parent=5 // pred_check
      _
    $region10: #{block_forward.2} parent=5 // pred_check_branch
      %149 = sbr.rel (%p146) target = $region12
    $region11: #{block_forward.2} parent=5 // pred_region
      %s150 = ssub.s32 %s11, 1
      // Predicated region
      $region13: #{block_forward.2} parent=11 // pred_check
        %p151 = pneg %p58
      $region14: #{block_forward.2} parent=11 // pred_check_branch
        %153 = sbr.rel (%p151) target = $region16
      $region15: #{block_forward.2} parent=11 // pred_region
        _
      $region16: #{block_forward.2} parent=11 // pred_fallthru
        _
    $region12: #{block_forward.2} parent=5 // pred_fallthru
      _
    %p154 = scmp.lt.s32.totalorder %s11, 4
    // Predicated region
    $region17: #{block_forward.2} parent=5 // pred_check
      %p155 = pneg %p154
    $region18: #{block_forward.2} parent=5 // pred_check_branch
      %157 = sbr.rel (%p155) target = $region20
    $region19: #{block_forward.2} parent=5 // pred_region
      // Predicated region
      $region21: #{block_forward.2} parent=19 // pred_check
        %p158 = pneg %p31
      $region22: #{block_forward.2} parent=19 // pred_check_branch
        %160 = sbr.rel (%p158) target = $region24
      $region23: #{block_forward.2} parent=19 // pred_region
        %s161 = smul.u32 16, %s11
        %p162 = scmp.lt.s32.totalorder %s161, 63
        %s163 = scalar_select %p162, %s161, 63
        %s164 = smul.addr %s163, 4
        %s165 = scalar_lea.vmem %s0, %s164
        %s166 = smul.u32 16, %s11
      $region24: #{block_forward.2} parent=19 // pred_fallthru
        _
    $region20: #{block_forward.2} parent=5 // pred_fallthru
      _
    %p167 = scmp.le.s32.totalorder 1, %s11
    %p168 = scmp.lt.s32.totalorder %s11, 5
    %p169 = pnand %p167, %p168
    %p170 = pneg %p169
    // Predicated region
    $region25: #{block_forward.2} parent=5 // pred_check
      _
    $region26: #{block_forward.2} parent=5 // pred_check_branch
      %172 = sbr.rel (%p169) target = $region28
    $region27: #{block_forward.2} parent=5 // pred_region
      %s173 = ssub.s32 %s11, 1
      %s174 = smul.u32 16, %s16
      %p175 = scmp.lt.s32.totalorder %s174, 63
      %s176 = scalar_select %p175, %s174, 63
      %s177 = smul.addr %s176, 4
      %s178 = scalar_lea.vmem %s0, %s177
      %p179 = pneg %p37
      %p180 = pneg %p34
      %p181 = pneg %p58
      %p182 = pneg %p55
      %p183 = pneg %p84
      %p184 = pneg %p81
      %s185 = smul.u32 16, %s16
      %p186 = scmp.lt.s32.totalorder %s185, 63
      %s187 = scalar_select %p186, %s185, 63
      %s188 = smul.addr %s187, 4
      %s189 = scalar_lea.vmem %s2, %s188
      %p190 = pneg %p110
      %p191 = pneg %p107
      %p192 = scmp.lt.s32.totalorder %s16, 3
      %s193 = scalar_select %p192, %s16, 3
      %s194 = smul.addr %s193, 8
      %s195 = scalar_lea.vmem %s3, %s194
      %p196 = pneg %p136
      %p197 = pneg %p133
      %p198 = scmp.lt.s32.totalorder %s16, 3
      %s199 = scalar_select %p198, %s16, 3
      %s200 = smul.addr %s199, 8
      %s201 = scalar_lea.vmem %s4, %s200
      %s202 = smul.u32 16, %s16
      %p203 = scmp.lt.s32.totalorder %s202, 63
      %s204 = scalar_select %p203, %s202, 63
      %s205 = smul.addr %s204, 4
      %s206 = scalar_lea.vmem %s0, %s205
      %s207 = smul.u32 16, %s16
      %s208 = smul.u32 16, %s16
      %p209 = scmp.lt.s32.totalorder %s208, 63
      %s210 = scalar_select %p209, %s208, 63
      %s211 = smul.addr %s210, 4
      %s212 = scalar_lea.vmem %s2, %s211
      %s213 = smul.u32 16, %s16
      %p214 = scmp.lt.s32.totalorder %s16, 3
      %s215 = scalar_select %p214, %s16, 3
      %s216 = smul.addr %s215, 8
      %s217 = scalar_lea.vmem %s3, %s216
      %p218 = scmp.lt.s32.totalorder %s16, 3
      %s219 = scalar_select %p218, %s16, 3
      %s220 = smul.addr %s219, 8
      %s221 = scalar_lea.vmem %s4, %s220
      %v223 = vld [vmem:[%s206] sm:$0xf]
      %v224 = vld [vmem:[%s206 + $0x4] sm:$0xf]
      %v225 = vld [vmem:[%s206 + $0x8] sm:$0xf]
      %v226 = vld [vmem:[%s206 + $0xc] sm:$0xf]
      %v227 = vld [vmem:[%s206 + $0x10] sm:$0xf]
      %v228 = vld [vmem:[%s206 + $0x14] sm:$0xf]
      %v229 = vld [vmem:[%s206 + $0x18] sm:$0xf]
      %v230 = vld [vmem:[%s206 + $0x1c] sm:$0xf]
      %v231 = vld [vmem:[%s206 + $0x20] sm:$0xf]
      %v232 = vld [vmem:[%s206 + $0x24] sm:$0xf]
      %v233 = vld [vmem:[%s206 + $0x28] sm:$0xf]
      %v234 = vld [vmem:[%s206 + $0x2c] sm:$0xf]
      %v235 = vld [vmem:[%s206 + $0x30] sm:$0xf]
      %v236 = vld [vmem:[%s206 + $0x34] sm:$0xf]
      %v237 = vld [vmem:[%s206 + $0x38] sm:$0xf]
      %v238 = vld [vmem:[%s206 + $0x3c] sm:$0xf]
      %v239 = vld [vmem:[%s1] sm:$0xf]
      %v240 = vld [vmem:[%s1 + $0x4] sm:$0xf]
      %v241 = vld [vmem:[%s1 + $0x8] sm:$0xf]
      %v242 = vld [vmem:[%s1 + $0xc] sm:$0xf]
      %v243 = vld [vmem:[%s1 + $0x10] sm:$0x3]
      %v260 = vunpack.c.l.b16 %v223
      %v261 = vunpack.c.l.b16 %v224
      %v262 = vunpack.c.l.b16 %v225
      %v263 = vunpack.c.l.b16 %v226
      %v264 = vunpack.c.l.b16 %v227
      %v265 = vunpack.c.l.b16 %v228
      %v266 = vunpack.c.l.b16 %v229
      %v267 = vunpack.c.l.b16 %v230
      %v268 = vunpack.c.l.b16 %v231
      %v269 = vunpack.c.l.b16 %v232
      %v270 = vunpack.c.l.b16 %v233
      %v271 = vunpack.c.l.b16 %v234
      %v272 = vunpack.c.l.b16 %v235
      %v273 = vunpack.c.l.b16 %v236
      %v274 = vunpack.c.l.b16 %v237
      %v275 = vunpack.c.l.b16 %v238
      %v276 = vpack.c.b16 %v261, %v260
      %v277 = vpack.c.b16 %v263, %v262
      %v278 = vpack.c.b16 %v265, %v264
      %v279 = vpack.c.b16 %v267, %v266
      %v280 = vpack.c.b16 %v269, %v268
      %v281 = vpack.c.b16 %v271, %v270
      %v282 = vpack.c.b16 %v273, %v272
      %v283 = vpack.c.b16 %v275, %v274
      %v289 = vunpack.c.l.b16 %v239
      %v290 = vunpack.c.l.b16 %v240
      %v291 = vunpack.c.l.b16 %v241
      %v292 = vunpack.c.l.b16 %v242
      %v293 = vunpack.c.l.b16 %v243
      %v294 = vpack.c.b16 %v290, %v289
      %v295 = vpack.c.b16 %v292, %v291
      %v296 = vpack.c.b16 %v293, %v293
      %vm299 = vcmask 293888
      %v301 = vsel %vm299, %v276, 0
      %v304 = vsel %vm299, %v277, 0
      %v307 = vsel %vm299, %v278, 0
      %v310 = vsel %vm299, %v279, 0
      %v313 = vsel %vm299, %v280, 0
      %v316 = vsel %vm299, %v281, 0
      %v319 = vsel %vm299, %v282, 0
      %v322 = vsel %vm299, %v283, 0
      %vm324 = vcmask 1041408
      %v326 = vsel %vm324, %v296, 0
      %328 = vmatprep.subr.bf16.mxu0 0
      %329 = vmatpush1.bf16.msra.mxu0 0
      %330 = vmatprep.subr.bf16.mxu0 0
      %331 = vmatpush1.bf16.msra.mxu0 0
      %332 = vmatprep.subr.bf16.mxu0 0
      %333 = vmatpush1.bf16.msra.mxu0 0
      %334 = vmatprep.subr.bf16.mxu0 0
      %335 = vmatpush1.bf16.msra.mxu0 0
      %336 = vmatprep.subr.bf16.mxu0 0
      %337 = vmatpush1.bf16.msra.mxu0 0
      %338 = vmatprep.subr.bf16.mxu0 0
      %339 = vmatpush1.bf16.msra.mxu0 %v326
      %340 = vmatprep.subr.bf16.mxu0 0
      %341 = vmatpush1.bf16.msra.mxu0 %v295
      %342 = vmatprep.subr.bf16.mxu0 0
      %343 = vmatpush1.bf16.msra.mxu0 %v294
      %344 = vmatprep.subr.bf16.mxu0 0
      %345 = vmatpush2.bf16.msra.mxu0 0
      %346 = vmatprep.subr.bf16.mxu0 0
      %347 = vmatpush2.bf16.msra.mxu0 0
      %348 = vmatprep.subr.bf16.mxu0 0
      %349 = vmatpush2.bf16.msra.mxu0 0
      %350 = vmatprep.subr.bf16.mxu0 0
      %351 = vmatpush2.bf16.msra.mxu0 0
      %352 = vmatprep.subr.bf16.mxu0 0
      %353 = vmatpush2.bf16.msra.mxu0 0
      %354 = vmatprep.subr.bf16.mxu0 0
      %355 = vmatpush2.bf16.msra.mxu0 0
      %356 = vmatprep.subr.bf16.mxu0 0
      %357 = vmatpush2.bf16.msra.mxu0 0
      %358 = vmatprep.subr.bf16.mxu0 0
      %359 = vmatpush2.bf16.msra.mxu0 0
      %360 = vmatprep.mubr.bf16.mxu0 0
      %361 = vmatmul.mubr.bf16.gmra.mxu0 %v301
      %v362 = vpop.f32.mrf.mxu0
      %v363 = vadd.f32 0.0, %v362
      %v364 = vpop.f32.mrf.mxu0
      %v365 = vpop.f32.mrf.mxu0
      %v366 = vadd.f32 0.0, %v365
      %v367 = vpop.f32.mrf.mxu0
      %368 = vmatprep.mubr.bf16.mxu0 0
      %369 = vmatmul.mubr.bf16.gmra.mxu0 %v304
      %v370 = vpop.f32.mrf.mxu0
      %v371 = vadd.f32 0.0, %v370
      %v372 = vpop.f32.mrf.mxu0
      %v373 = vpop.f32.mrf.mxu0
      %v374 = vadd.f32 0.0, %v373
      %v375 = vpop.f32.mrf.mxu0
      %376 = vmatprep.mubr.bf16.mxu0 0
      %377 = vmatmul.mubr.bf16.gmra.mxu0 %v307
      %v378 = vpop.f32.mrf.mxu0
      %v379 = vadd.f32 0.0, %v378
      %v380 = vpop.f32.mrf.mxu0
      %v381 = vpop.f32.mrf.mxu0
      %v382 = vadd.f32 0.0, %v381
      %v383 = vpop.f32.mrf.mxu0
      %384 = vmatprep.mubr.bf16.mxu0 0
      %385 = vmatmul.mubr.bf16.gmra.mxu0 %v310
      %v386 = vpop.f32.mrf.mxu0
      %v387 = vadd.f32 0.0, %v386
      %v388 = vpop.f32.mrf.mxu0
      %v389 = vpop.f32.mrf.mxu0
      %v390 = vadd.f32 0.0, %v389
      %v391 = vpop.f32.mrf.mxu0
      %392 = vmatprep.mubr.bf16.mxu0 0
      %393 = vmatmul.mubr.bf16.gmra.mxu0 %v313
      %v394 = vpop.f32.mrf.mxu0
      %v395 = vadd.f32 0.0, %v394
      %v396 = vpop.f32.mrf.mxu0
      %v397 = vpop.f32.mrf.mxu0
      %v398 = vadd.f32 0.0, %v397
      %v399 = vpop.f32.mrf.mxu0
      %400 = vmatprep.mubr.bf16.mxu0 0
      %401 = vmatmul.mubr.bf16.gmra.mxu0 %v316
      %v402 = vpop.f32.mrf.mxu0
      %v403 = vadd.f32 0.0, %v402
      %v404 = vpop.f32.mrf.mxu0
      %v405 = vpop.f32.mrf.mxu0
      %v406 = vadd.f32 0.0, %v405
      %v407 = vpop.f32.mrf.mxu0
      %408 = vmatprep.mubr.bf16.mxu0 0
      %409 = vmatmul.mubr.bf16.gmra.mxu0 %v319
      %v410 = vpop.f32.mrf.mxu0
      %v411 = vadd.f32 0.0, %v410
      %v412 = vpop.f32.mrf.mxu0
      %v413 = vpop.f32.mrf.mxu0
      %v414 = vadd.f32 0.0, %v413
      %v415 = vpop.f32.mrf.mxu0
      %416 = vmatprep.mubr.bf16.mxu0 0
      %417 = vmatmul.mubr.bf16.gmra.mxu0 %v322
      %v418 = vpop.f32.mrf.mxu0
      %v419 = vadd.f32 0.0, %v418
      %v420 = vpop.f32.mrf.mxu0
      %v421 = vpop.f32.mrf.mxu0
      %v422 = vadd.f32 0.0, %v421
      %v423 = vpop.f32.mrf.mxu0
      %424 = vdwg.mxu0
      %v425 = vadd.f32 %v363, %v366
      %v426 = vadd.f32 %v425, %v371
      %v427 = vadd.f32 %v426, %v374
      %v428 = vadd.f32 %v427, %v379
      %v429 = vadd.f32 %v428, %v382
      %v430 = vadd.f32 %v429, %v387
      %v431 = vadd.f32 %v430, %v390
      %v432 = vadd.f32 %v431, %v395
      %v433 = vadd.f32 %v432, %v398
      %v434 = vadd.f32 %v433, %v403
      %v435 = vadd.f32 %v434, %v406
      %v436 = vadd.f32 %v435, %v411
      %v437 = vadd.f32 %v436, %v414
      %v438 = vadd.f32 %v437, %v419
      %v439 = vadd.f32 %v438, %v422
      %440 = vst [vmem:[%s217] sm:$0xff] %v439
      %v441 = vmul.f32 %v363, %v363
      %v442 = vmul.f32 %v366, %v366
      %v443 = vmul.f32 %v371, %v371
      %v444 = vmul.f32 %v374, %v374
      %v445 = vmul.f32 %v379, %v379
      %v446 = vmul.f32 %v382, %v382
      %v447 = vmul.f32 %v387, %v387
      %v448 = vmul.f32 %v390, %v390
      %v449 = vmul.f32 %v395, %v395
      %v450 = vmul.f32 %v398, %v398
      %v451 = vmul.f32 %v403, %v403
      %v452 = vmul.f32 %v406, %v406
      %v453 = vmul.f32 %v411, %v411
      %v454 = vmul.f32 %v414, %v414
      %v455 = vmul.f32 %v419, %v419
      %v456 = vmul.f32 %v422, %v422
      %v457 = vadd.f32 %v441, %v442
      %v458 = vadd.f32 %v457, %v443
      %v459 = vadd.f32 %v458, %v444
      %v460 = vadd.f32 %v459, %v445
      %v461 = vadd.f32 %v460, %v446
      %v462 = vadd.f32 %v461, %v447
      %v463 = vadd.f32 %v462, %v448
      %v464 = vadd.f32 %v463, %v449
      %v465 = vadd.f32 %v464, %v450
      %v466 = vadd.f32 %v465, %v451
      %v467 = vadd.f32 %v466, %v452
      %v468 = vadd.f32 %v467, %v453
      %v469 = vadd.f32 %v468, %v454
      %v470 = vadd.f32 %v469, %v455
      %v471 = vadd.f32 %v470, %v456
      %472 = vst [vmem:[%s221] sm:$0xff] %v471
      %v473 = vpack.c.bf16 %v366, %v363
      %v474 = vpack.c.bf16 %v374, %v371
      %v475 = vpack.c.bf16 %v382, %v379
      %v476 = vpack.c.bf16 %v390, %v387
      %v477 = vpack.c.bf16 %v398, %v395
      %v478 = vpack.c.bf16 %v406, %v403
      %v479 = vpack.c.bf16 %v414, %v411
      %v480 = vpack.c.bf16 %v422, %v419
      %v489 = vunpack.c.l.b16 %v473
      %v490 = vunpack.c.h.b16 %v473
      %v491 = vunpack.c.l.b16 %v474
      %v492 = vunpack.c.h.b16 %v474
      %v493 = vunpack.c.l.b16 %v475
      %v494 = vunpack.c.h.b16 %v475
      %v495 = vunpack.c.l.b16 %v476
      %v496 = vunpack.c.h.b16 %v476
      %v497 = vunpack.c.l.b16 %v477
      %v498 = vunpack.c.h.b16 %v477
      %v499 = vunpack.c.l.b16 %v478
      %v500 = vunpack.c.h.b16 %v478
      %v501 = vunpack.c.l.b16 %v479
      %v502 = vunpack.c.h.b16 %v479
      %v503 = vunpack.c.l.b16 %v480
      %v504 = vunpack.c.h.b16 %v480
      %v505 = vpack.c.b16 %v489, %v489
      %v506 = vpack.c.b16 %v490, %v490
      %v507 = vpack.c.b16 %v491, %v491
      %v508 = vpack.c.b16 %v492, %v492
      %v509 = vpack.c.b16 %v493, %v493
      %v510 = vpack.c.b16 %v494, %v494
      %v511 = vpack.c.b16 %v495, %v495
      %v512 = vpack.c.b16 %v496, %v496
      %v513 = vpack.c.b16 %v497, %v497
      %v514 = vpack.c.b16 %v498, %v498
      %v515 = vpack.c.b16 %v499, %v499
      %v516 = vpack.c.b16 %v500, %v500
      %v517 = vpack.c.b16 %v501, %v501
      %v518 = vpack.c.b16 %v502, %v502
      %v519 = vpack.c.b16 %v503, %v503
      %v520 = vpack.c.b16 %v504, %v504
      %vm537 = vcmask 60416
      %538 = vst.msk [vmem:[%s212] sm:$0xf] %vm537, %v505
      %539 = vst.msk [vmem:[%s212 + $0x4] sm:$0xf] %vm537, %v506
      %540 = vst.msk [vmem:[%s212 + $0x8] sm:$0xf] %vm537, %v507
      %541 = vst.msk [vmem:[%s212 + $0xc] sm:$0xf] %vm537, %v508
      %542 = vst.msk [vmem:[%s212 + $0x10] sm:$0xf] %vm537, %v509
      %543 = vst.msk [vmem:[%s212 + $0x14] sm:$0xf] %vm537, %v510
      %544 = vst.msk [vmem:[%s212 + $0x18] sm:$0xf] %vm537, %v511
      %545 = vst.msk [vmem:[%s212 + $0x1c] sm:$0xf] %vm537, %v512
      %546 = vst.msk [vmem:[%s212 + $0x20] sm:$0xf] %vm537, %v513
      %547 = vst.msk [vmem:[%s212 + $0x24] sm:$0xf] %vm537, %v514
      %548 = vst.msk [vmem:[%s212 + $0x28] sm:$0xf] %vm537, %v515
      %549 = vst.msk [vmem:[%s212 + $0x2c] sm:$0xf] %vm537, %v516
      %550 = vst.msk [vmem:[%s212 + $0x30] sm:$0xf] %vm537, %v517
      %551 = vst.msk [vmem:[%s212 + $0x34] sm:$0xf] %vm537, %v518
      %552 = vst.msk [vmem:[%s212 + $0x38] sm:$0xf] %vm537, %v519
      %553 = vst.msk [vmem:[%s212 + $0x3c] sm:$0xf] %vm537, %v520
      %s554 = smul.u32 16, %s16
      %p555 = scmp.lt.s32.totalorder %s554, 63
      %s556 = scalar_select %p555, %s554, 63
      %s557 = smul.addr %s556, 4
      %s558 = scalar_lea.vmem %s2, %s557
      %p559 = scmp.lt.s32.totalorder %s16, 3
      %s560 = scalar_select %p559, %s16, 3
      %s561 = smul.addr %s560, 8
      %s562 = scalar_lea.vmem %s3, %s561
      %p563 = scmp.lt.s32.totalorder %s16, 3
      %s564 = scalar_select %p563, %s16, 3
      %s565 = smul.addr %s564, 8
      %s566 = scalar_lea.vmem %s4, %s565
      // Predicated region
      $region29: #{block_forward.2} parent=27 // pred_check
        %p567 = pneg %p81
      $region30: #{block_forward.2} parent=27 // pred_check_branch
        %569 = sbr.rel (%p567) target = $region32
      $region31: #{block_forward.2} parent=27 // pred_region
        %s570 = smul.u32 16, %s16
      $region32: #{block_forward.2} parent=27 // pred_fallthru
        _
      // Predicated region
      $region33: #{block_forward.2} parent=27 // pred_check
        %p571 = pneg %p107
      $region34: #{block_forward.2} parent=27 // pred_check_branch
        %573 = sbr.rel (%p571) target = $region36
      $region35: #{block_forward.2} parent=27 // pred_region
        _
      $region36: #{block_forward.2} parent=27 // pred_fallthru
        _
      // Predicated region
      $region37: #{block_forward.2} parent=27 // pred_check
        %p574 = pneg %p133
      $region38: #{block_forward.2} parent=27 // pred_check_branch
        %576 = sbr.rel (%p574) target = $region40
      $region39: #{block_forward.2} parent=27 // pred_region
        _
      $region40: #{block_forward.2} parent=27 // pred_fallthru
        _
    $region28: #{block_forward.2} parent=5 // pred_fallthru
      _
    %p577 = scmp.le.s32.totalorder 2, %s11
    // Predicated region
    $region41: #{block_forward.2} parent=5 // pred_check
      %p578 = pneg %p577
    $region42: #{block_forward.2} parent=5 // pred_check_branch
      %580 = sbr.rel (%p578) target = $region44
    $region43: #{block_forward.2} parent=5 // pred_region
      %s581 = ssub.s32 %s11, 2
      // Predicated region
      $region45: #{block_forward.2} parent=43 // pred_check
        %p582 = pneg %p87
      $region46: #{block_forward.2} parent=43 // pred_check_branch
        %584 = sbr.rel (%p582) target = $region48
      $region47: #{block_forward.2} parent=43 // pred_region
        %s585 = smul.u32 16, %s17
        %p586 = scmp.lt.s32.totalorder %s585, 63
        %s587 = scalar_select %p586, %s585, 63
        %s588 = smul.addr %s587, 4
        %s589 = scalar_lea.vmem %s2, %s588
      $region48: #{block_forward.2} parent=43 // pred_fallthru
        _
      // Predicated region
      $region49: #{block_forward.2} parent=43 // pred_check
        %p590 = pneg %p113
      $region50: #{block_forward.2} parent=43 // pred_check_branch
        %592 = sbr.rel (%p590) target = $region52
      $region51: #{block_forward.2} parent=43 // pred_region
        %p593 = scmp.lt.s32.totalorder %s17, 3
        %s594 = scalar_select %p593, %s17, 3
        %s595 = smul.addr %s594, 8
        %s596 = scalar_lea.vmem %s3, %s595
      $region52: #{block_forward.2} parent=43 // pred_fallthru
        _
      // Predicated region
      $region53: #{block_forward.2} parent=43 // pred_check
        %p597 = pneg %p139
      $region54: #{block_forward.2} parent=43 // pred_check_branch
        %599 = sbr.rel (%p597) target = $region56
      $region55: #{block_forward.2} parent=43 // pred_region
        %p600 = scmp.lt.s32.totalorder %s17, 3
        %s601 = scalar_select %p600, %s17, 3
        %s602 = smul.addr %s601, 8
        %s603 = scalar_lea.vmem %s4, %s602
      $region56: #{block_forward.2} parent=43 // pred_fallthru
        _
    $region44: #{block_forward.2} parent=5 // pred_fallthru
      _
  $region6: #{block_forward.2} parent=0 // loop_footer
    %s15 = sadd.s32 1, %s11
  $region7: #{block_forward.2} parent=0 // loop_footer_branch
    %10 = sbr.rel target = $region3
  $region8: #{block_forward.2} parent=0 // loop_exit
    _

</llo_original>
